<compile_context>
chip_gen: v6e
topology: v6e:2x2x1
jax: 0.10.0
libtpu: 0.0.40
codegen_flags: <defaults>
</compile_context>

<pallas_src>
import functools

import jax
import jax.numpy as jnp
from jax import lax
from jax.experimental import pallas as pl
from jax.experimental.pallas import tpu as pltpu

EMBED = 64     # embed_size (small stand-in for 100)
LABEL = 2      # label_size
LANE = 128     # lane-padded width used for hidden states and projections
VOCAB = 64     # vocab.total_words (synthetic)


def _round_up(x, m):
    return ((x + m - 1) // m) * m


def tree_rnn_kernel(sched_ref, leaf_h_ref, wl_ref, bl2_ref, wp_ref, bp_ref,
                    out_ref, h_ref, g_ref, *, levels):
    """Level-synchronous (wavefront) evaluation of the tree RNN.

    sched_ref : SMEM int32 (3, n_int_pad)  rows = [node_idx, left_idx, right_idx];
                internal nodes flattened level by level (children always live in earlier levels).
    leaf_h_ref: VMEM (n_pad, LANE)  initial hidden states: embedding rows for leaves, 0 elsewhere.
    wl_ref    : VMEM (LANE, LANE)   fcl weight transposed to (in, out), zero-padded.
    bl2_ref   : VMEM (1, LANE)      2 * fcl bias (bias applied once per child, as in the torch code).
    wp_ref    : VMEM (LANE, LANE)   projection weight transposed, zero-padded.
    bp_ref    : VMEM (1, LANE)      projection bias, zero-padded.
    out_ref   : VMEM (n_pad, LANE)  per-node projection (lane-padded).
    h_ref     : VMEM scratch (n_pad, LANE)        per-node hidden state.
    g_ref     : VMEM scratch (max_lvl_pad, LANE)  per-level gather buffer.
    levels    : static tuple of (start, count) into sched_ref, one entry per depth level.
    """
    # Bulk leaf init: one dense VMEM copy instead of per-node embedding selects.
    h_ref[...] = leaf_h_ref[...]

    # Hoist loop-invariant weight/bias reads (stay resident in vregs across the walk).
    W = wl_ref[...]
    b2 = bl2_ref[...]

    # Wavefront over depth levels: all nodes in a level depend only on earlier levels,
    # so each level is one batched MXU matmul instead of level_width serial (1,64) matmuls.
    for start, count in levels:                      # static: level structure is compile-time
        cp = _round_up(count, 8)

        def gather(j, carry, start=start):
            li = sched_ref[1, start + j]
            ri = sched_ref[2, start + j]
            # Linearity: fcl(hl) + fcl(hr) == (hl + hr) @ W + 2b -> gather the sum once.
            g_ref[pl.ds(j, 1), :] = h_ref[pl.ds(li, 1), :] + h_ref[pl.ds(ri, 1), :]
            return carry

        lax.fori_loop(0, count, gather, 0, unroll=True)

        z = jnp.dot(g_ref[0:cp, :], W, preferred_element_type=jnp.float32) + b2
        g_ref[0:cp, :] = jnp.maximum(z, 0.0)

        def scatter(j, carry, start=start):
            ni = sched_ref[0, start + j]
            h_ref[pl.ds(ni, 1), :] = g_ref[pl.ds(j, 1), :]
            return carry

        lax.fori_loop(0, count, scatter, 0, unroll=True)

    # One batched, lane/sublane-dense projection for every node (replaces per-node
    # (1,64)x(64,2) matmuls and masked single-row stores); also writes padding rows,
    # so no part of out_ref is left uninitialized.
    out_ref[...] = (jnp.dot(h_ref[...], wp_ref[...], preferred_element_type=jnp.float32)
                    + bp_ref[...])


def build_levels(node_type, left, right, num_nodes):
    """Host preprocessing: group internal nodes into depth levels (wavefront schedule)."""
    depth = [0] * num_nodes
    for i in range(num_nodes):              # post-order: children precede parents
        if node_type[i] != 0:
            depth[i] = 1 + max(depth[left[i]], depth[right[i]])
    max_d = max(depth) if num_nodes else 0
    sched_node, sched_left, sched_right, levels = [], [], [], []
    for d in range(1, max_d + 1):
        lvl = [i for i in range(num_nodes) if node_type[i] != 0 and depth[i] == d]
        levels.append((len(sched_node), len(lvl)))
        for i in lvl:
            sched_node.append(i)
            sched_left.append(left[i])
            sched_right.append(right[i])
    return sched_node, sched_left, sched_right, tuple(levels)


def tree_rnn_forward(node_type, word_id, left, right, emb, fcl_w, fcl_b, proj_w, proj_b):
    """Tree given in post-order as python lists. Returns (num_nodes, 1, LABEL)."""
    num_nodes = len(node_type)
    n_pad = max(8, _round_up(num_nodes, 8))

    sched_node, sched_left, sched_right, levels = build_levels(node_type, left, right, num_nodes)
    n_int = len(sched_node)
    n_int_pad = max(8, _round_up(n_int, 8))
    max_lvl_pad = max([_round_up(c, 8) for _, c in levels] + [8])

    sched = jnp.zeros((3, n_int_pad), jnp.int32)
    if n_int:
        sched = sched.at[0, :n_int].set(jnp.array(sched_node, jnp.int32))
        sched = sched.at[1, :n_int].set(jnp.array(sched_left, jnp.int32))
        sched = sched.at[2, :n_int].set(jnp.array(sched_right, jnp.int32))

    # Leaf embeddings gathered in one pass (internal / padding rows -> 0); keeps the vocab
    # table out of VMEM entirely -- only the (n_pad, LANE) leaf slab enters the kernel.
    # TODO(synk): for realistic vocab sizes, switch to an HBM-resident table (memory_space=pl.ANY)
    # with scalar-prefetched ids + make_async_copy gather instead of a wrapper-side take.
    leaf_mask = jnp.array([1.0 if (i < num_nodes and node_type[i] == 0) else 0.0
                           for i in range(n_pad)], jnp.float32)
    word_ids = jnp.array([word_id[i] if i < num_nodes else 0 for i in range(n_pad)], jnp.int32)
    emb_pad = jnp.zeros((emb.shape[0], LANE), jnp.float32).at[:, :EMBED].set(
        emb.astype(jnp.float32))
    leaf_h = emb_pad[word_ids] * leaf_mask[:, None]                        # (n_pad, LANE)

    # Linear weights transposed to (in, out) so the kernel computes x @ W + b (== torch x @ W.T + b),
    # zero-padded to the full 128-lane width.
    wl = jnp.zeros((LANE, LANE), jnp.float32).at[:EMBED, :EMBED].set(fcl_w.T.astype(jnp.float32))
    bl2 = jnp.zeros((1, LANE), jnp.float32).at[0, :EMBED].set(2.0 * fcl_b.astype(jnp.float32))
    wp = jnp.zeros((LANE, LANE), jnp.float32).at[:EMBED, :LABEL].set(proj_w.T.astype(jnp.float32))
    bp = jnp.zeros((1, LANE), jnp.float32).at[0, :LABEL].set(proj_b.astype(jnp.float32))

    # TODO(synk): for a batch of trees, add a leading "parallel" grid axis over trees so the
    # two TensorCores on v7x each take half the batch.
    out = pl.pallas_call(
        functools.partial(tree_rnn_kernel, levels=levels),
        out_shape=jax.ShapeDtypeStruct((n_pad, LANE), jnp.float32),
        in_specs=[
            pl.BlockSpec(memory_space=pltpu.MemorySpace.SMEM),   # schedule (scalars)
            pl.BlockSpec(memory_space=pltpu.MemorySpace.VMEM),   # leaf hidden states
            pl.BlockSpec(memory_space=pltpu.MemorySpace.VMEM),   # fcl weight (padded, transposed)
            pl.BlockSpec(memory_space=pltpu.MemorySpace.VMEM),   # 2 * fcl bias
            pl.BlockSpec(memory_space=pltpu.MemorySpace.VMEM),   # projection weight
            pl.BlockSpec(memory_space=pltpu.MemorySpace.VMEM),   # projection bias
        ],
        out_specs=pl.BlockSpec(memory_space=pltpu.MemorySpace.VMEM),
        scratch_shapes=[pltpu.VMEM((n_pad, LANE), jnp.float32),       # h_ref
                        pltpu.VMEM((max_lvl_pad, LANE), jnp.float32)],  # g_ref
    )(sched, leaf_h, wl, bl2, wp, bp)

    # torch.cat of per-node projection(h).unsqueeze(0) -> (num_nodes, 1, label)
    return out[:num_nodes, :LABEL][:, None, :]


def ref_forward(node_type, word_id, left, right, num_nodes, emb, fcl_w, fcl_b, proj_w, proj_b):
    """Pure-JAX reference mirroring walk_tree exactly (post-order, fcl+bias per child)."""
    hs, outs = [], []
    for i in range(num_nodes):
        if node_type[i] == 0:
            h = emb[word_id[i]][None, :]
        else:
            h = jax.nn.relu(hs[left[i]] @ fcl_w.T + fcl_b
                            + hs[right[i]] @ fcl_w.T + fcl_b)
        hs.append(h)
        outs.append((h @ proj_w.T + proj_b)[None])
    return jnp.concatenate(outs, axis=0)


if __name__ == "__main__":
    key = jax.random.PRNGKey(0)
    k_emb, k_wl, k_bl, k_wp, k_bp = jax.random.split(key, 5)

    # Deterministic parameter init (matching the __init__ shapes):
    #   nn.Embedding(VOCAB, EMBED), nn.Linear(EMBED, EMBED), nn.Linear(EMBED, LABEL)
    emb = jax.random.normal(k_emb, (VOCAB, EMBED), jnp.float32)
    bnd_l = 1.0 / (EMBED ** 0.5)
    fcl_w = jax.random.uniform(k_wl, (EMBED, EMBED), jnp.float32, -bnd_l, bnd_l)   # (out, in)
    fcl_b = jax.random.uniform(k_bl, (EMBED,), jnp.float32, -bnd_l, bnd_l)
    proj_w = jax.random.uniform(k_wp, (LABEL, EMBED), jnp.float32, -bnd_l, bnd_l)  # (out, in)
    proj_b = jax.random.uniform(k_bp, (LABEL,), jnp.float32, -bnd_l, bnd_l)

    # Synthetic parse tree:  ((w3 (w7 w1)) (w5 w9))   flattened in post-order
    # idx:        0        1        2        3           4           5        6        7           8
    node_type = [0,       0,       0,       1,          1,          0,       0,       1,          1]
    word_id   = [3,       7,       1,       0,          0,          5,       9,       0,          0]
    left      = [0,       0,       0,       1,          0,          0,       0,       5,          4]
    right     = [0,       0,       0,       2,          3,          0,       0,       6,          7]
    num_nodes = len(node_type)

    out = tree_rnn_forward(node_type, word_id, left, right,
                           emb, fcl_w, fcl_b, proj_w, proj_b)
    out = jax.block_until_ready(out)

    ref = ref_forward(node_type, word_id, left, right, num_nodes,
                      emb, fcl_w, fcl_b, proj_w, proj_b)
    assert out.shape == (num_nodes, 1, LABEL), out.shape
    assert jnp.allclose(out, ref, atol=1e-4, rtol=1e-4), (out, ref)

    print("KERNEL_OK")
</pallas_src>

<mosaic_0001>
module attributes {stable_mosaic.version = 11 : i64} {
  func.func @tree_rnn_kernel(%arg0: memref<3x8xi32, #tpu.memory_space<smem>>, %arg1: memref<16x128xf32, #tpu.memory_space<vmem>>, %arg2: memref<128x128xf32, #tpu.memory_space<vmem>>, %arg3: memref<1x128xf32, #tpu.memory_space<vmem>>, %arg4: memref<128x128xf32, #tpu.memory_space<vmem>>, %arg5: memref<1x128xf32, #tpu.memory_space<vmem>>, %arg6: memref<16x128xf32, #tpu.memory_space<vmem>>, %arg7: memref<16x128xf32, #tpu.memory_space<vmem>>, %arg8: memref<8x128xf32, #tpu.memory_space<vmem>>) attributes {dimension_semantics = [], scalar_prefetch = 0 : i64, scratch_operands = 2 : i64, tpu.core_type = #tpu.core_type<tc>} {
    %c0 = arith.constant 0 : index
    %c0_0 = arith.constant 0 : index
    %0 = vector.load %arg1[%c0, %c0_0] : memref<16x128xf32, #tpu.memory_space<vmem>>, vector<16x128xf32>
    %c0_1 = arith.constant 0 : index
    %c0_2 = arith.constant 0 : index
    %1 = vector.load %arg7[%c0_1, %c0_2] : memref<16x128xf32, #tpu.memory_space<vmem>>, vector<16x128xf32>
    tpu.vector_store %arg7[%c0_1, %c0_2], %0 {strides = array<i32>} : memref<16x128xf32, #tpu.memory_space<vmem>>, vector<16x128xf32>,
    %c0_3 = arith.constant 0 : index
    %c0_4 = arith.constant 0 : index
    %2 = vector.load %arg2[%c0_3, %c0_4] : memref<128x128xf32, #tpu.memory_space<vmem>>, vector<128x128xf32>
    %c0_5 = arith.constant 0 : index
    %c0_6 = arith.constant 0 : index
    %3 = vector.load %arg3[%c0_5, %c0_6] : memref<1x128xf32, #tpu.memory_space<vmem>>, vector<1x128xf32>
    %c0_i32 = arith.constant 0 : i32
    %c0_i32_7 = arith.constant 0 : i32
    %4 = arith.addi %c0_i32_7, %c0_i32 : i32
    %c1 = arith.constant 1 : index
    %5 = arith.index_cast %4 : i32 to index
    %6 = memref.load %arg0[%c1, %5] : memref<3x8xi32, #tpu.memory_space<smem>>
    %c0_i32_8 = arith.constant 0 : i32
    %7 = arith.addi %c0_i32_8, %c0_i32 : i32
    %c2 = arith.constant 2 : index
    %8 = arith.index_cast %7 : i32 to index
    %9 = memref.load %arg0[%c2, %8] : memref<3x8xi32, #tpu.memory_space<smem>>
    %10 = arith.index_cast %6 : i32 to index
    %c0_9 = arith.constant 0 : index
    %11 = vector.load %arg7[%10, %c0_9] : memref<16x128xf32, #tpu.memory_space<vmem>>, vector<1x128xf32>
    %12 = arith.index_cast %9 : i32 to index
    %c0_10 = arith.constant 0 : index
    %13 = vector.load %arg7[%12, %c0_10] : memref<16x128xf32, #tpu.memory_space<vmem>>, vector<1x128xf32>
    %14 = arith.addf %11, %13 : vector<1x128xf32>
    %15 = arith.index_cast %c0_i32 : i32 to index
    %c0_11 = arith.constant 0 : index
    %16 = vector.load %arg8[%15, %c0_11] : memref<8x128xf32, #tpu.memory_space<vmem>>, vector<1x128xf32>
    tpu.vector_store %arg8[%15, %c0_11], %14 {strides = array<i32>} : memref<8x128xf32, #tpu.memory_space<vmem>>, vector<1x128xf32>,
    %c1_i32 = arith.constant 1 : i32
    %c0_i32_12 = arith.constant 0 : i32
    %17 = arith.addi %c0_i32_12, %c1_i32 : i32
    %c1_13 = arith.constant 1 : index
    %18 = arith.index_cast %17 : i32 to index
    %19 = memref.load %arg0[%c1_13, %18] : memref<3x8xi32, #tpu.memory_space<smem>>
    %c0_i32_14 = arith.constant 0 : i32
    %20 = arith.addi %c0_i32_14, %c1_i32 : i32
    %c2_15 = arith.constant 2 : index
    %21 = arith.index_cast %20 : i32 to index
    %22 = memref.load %arg0[%c2_15, %21] : memref<3x8xi32, #tpu.memory_space<smem>>
    %23 = arith.index_cast %19 : i32 to index
    %c0_16 = arith.constant 0 : index
    %24 = vector.load %arg7[%23, %c0_16] : memref<16x128xf32, #tpu.memory_space<vmem>>, vector<1x128xf32>
    %25 = arith.index_cast %22 : i32 to index
    %c0_17 = arith.constant 0 : index
    %26 = vector.load %arg7[%25, %c0_17] : memref<16x128xf32, #tpu.memory_space<vmem>>, vector<1x128xf32>
    %27 = arith.addf %24, %26 : vector<1x128xf32>
    %28 = arith.index_cast %c1_i32 : i32 to index
    %c0_18 = arith.constant 0 : index
    %29 = vector.load %arg8[%28, %c0_18] : memref<8x128xf32, #tpu.memory_space<vmem>>, vector<1x128xf32>
    tpu.vector_store %arg8[%28, %c0_18], %27 {strides = array<i32>} : memref<8x128xf32, #tpu.memory_space<vmem>>, vector<1x128xf32>,
    %c2_i32 = arith.constant 2 : i32
    %c0_19 = arith.constant 0 : index
    %c0_20 = arith.constant 0 : index
    %30 = vector.load %arg8[%c0_19, %c0_20] : memref<8x128xf32, #tpu.memory_space<vmem>>, vector<8x128xf32>
    %cst = arith.constant dense<0.000000e+00> : vector<8x128xf32>
    %31 = tpu.matmul %30, %2, %cst {dimension_numbers = #tpu.dot_dimension_numbers<[1], [0], [0], [1], [0, 0, 1, 1], [], []>} : vector<8x128xf32>, vector<128x128xf32>, vector<8x128xf32> -> vector<8x128xf32>
    %32 = vector.broadcast %3 : vector<1x128xf32> to vector<8x128xf32>
    %33 = arith.addf %31, %32 : vector<8x128xf32>
    %cst_21 = arith.constant 0.000000e+00 : f32
    %34 = vector.broadcast %cst_21 : f32 to vector<8x128xf32>
    %35 = arith.maximumf %33, %34 : vector<8x128xf32>
    %c0_22 = arith.constant 0 : index
    %c0_23 = arith.constant 0 : index
    %36 = vector.load %arg8[%c0_22, %c0_23] : memref<8x128xf32, #tpu.memory_space<vmem>>, vector<8x128xf32>
    tpu.vector_store %arg8[%c0_22, %c0_23], %35 {strides = array<i32>} : memref<8x128xf32, #tpu.memory_space<vmem>>, vector<8x128xf32>,
    %c0_i32_24 = arith.constant 0 : i32
    %c0_i32_25 = arith.constant 0 : i32
    %37 = arith.addi %c0_i32_25, %c0_i32_24 : i32
    %c0_26 = arith.constant 0 : index
    %38 = arith.index_cast %37 : i32 to index
    %39 = memref.load %arg0[%c0_26, %38] : memref<3x8xi32, #tpu.memory_space<smem>>
    %40 = arith.index_cast %c0_i32_24 : i32 to index
    %c0_27 = arith.constant 0 : index
    %41 = vector.load %arg8[%40, %c0_27] : memref<8x128xf32, #tpu.memory_space<vmem>>, vector<1x128xf32>
    %42 = arith.index_cast %39 : i32 to index
    %c0_28 = arith.constant 0 : index
    %43 = vector.load %arg7[%42, %c0_28] : memref<16x128xf32, #tpu.memory_space<vmem>>, vector<1x128xf32>
    tpu.vector_store %arg7[%42, %c0_28], %41 {strides = array<i32>} : memref<16x128xf32, #tpu.memory_space<vmem>>, vector<1x128xf32>,
    %c1_i32_29 = arith.constant 1 : i32
    %c0_i32_30 = arith.constant 0 : i32
    %44 = arith.addi %c0_i32_30, %c1_i32_29 : i32
    %c0_31 = arith.constant 0 : index
    %45 = arith.index_cast %44 : i32 to index
    %46 = memref.load %arg0[%c0_31, %45] : memref<3x8xi32, #tpu.memory_space<smem>>
    %47 = arith.index_cast %c1_i32_29 : i32 to index
    %c0_32 = arith.constant 0 : index
    %48 = vector.load %arg8[%47, %c0_32] : memref<8x128xf32, #tpu.memory_space<vmem>>, vector<1x128xf32>
    %49 = arith.index_cast %46 : i32 to index
    %c0_33 = arith.constant 0 : index
    %50 = vector.load %arg7[%49, %c0_33] : memref<16x128xf32, #tpu.memory_space<vmem>>, vector<1x128xf32>
    tpu.vector_store %arg7[%49, %c0_33], %48 {strides = array<i32>} : memref<16x128xf32, #tpu.memory_space<vmem>>, vector<1x128xf32>,
    %c2_i32_34 = arith.constant 2 : i32
    %c0_i32_35 = arith.constant 0 : i32
    %c2_i32_36 = arith.constant 2 : i32
    %51 = arith.addi %c2_i32_36, %c0_i32_35 : i32
    %c1_37 = arith.constant 1 : index
    %52 = arith.index_cast %51 : i32 to index
    %53 = memref.load %arg0[%c1_37, %52] : memref<3x8xi32, #tpu.memory_space<smem>>
    %c2_i32_38 = arith.constant 2 : i32
    %54 = arith.addi %c2_i32_38, %c0_i32_35 : i32
    %c2_39 = arith.constant 2 : index
    %55 = arith.index_cast %54 : i32 to index
    %56 = memref.load %arg0[%c2_39, %55] : memref<3x8xi32, #tpu.memory_space<smem>>
    %57 = arith.index_cast %53 : i32 to index
    %c0_40 = arith.constant 0 : index
    %58 = vector.load %arg7[%57, %c0_40] : memref<16x128xf32, #tpu.memory_space<vmem>>, vector<1x128xf32>
    %59 = arith.index_cast %56 : i32 to index
    %c0_41 = arith.constant 0 : index
    %60 = vector.load %arg7[%59, %c0_41] : memref<16x128xf32, #tpu.memory_space<vmem>>, vector<1x128xf32>
    %61 = arith.addf %58, %60 : vector<1x128xf32>
    %62 = arith.index_cast %c0_i32_35 : i32 to index
    %c0_42 = arith.constant 0 : index
    %63 = vector.load %arg8[%62, %c0_42] : memref<8x128xf32, #tpu.memory_space<vmem>>, vector<1x128xf32>
    tpu.vector_store %arg8[%62, %c0_42], %61 {strides = array<i32>} : memref<8x128xf32, #tpu.memory_space<vmem>>, vector<1x128xf32>,
    %c1_i32_43 = arith.constant 1 : i32
    %c0_44 = arith.constant 0 : index
    %c0_45 = arith.constant 0 : index
    %64 = vector.load %arg8[%c0_44, %c0_45] : memref<8x128xf32, #tpu.memory_space<vmem>>, vector<8x128xf32>
    %cst_46 = arith.constant dense<0.000000e+00> : vector<8x128xf32>
    %65 = tpu.matmul %64, %2, %cst_46 {dimension_numbers = #tpu.dot_dimension_numbers<[1], [0], [0], [1], [0, 0, 1, 1], [], []>} : vector<8x128xf32>, vector<128x128xf32>, vector<8x128xf32> -> vector<8x128xf32>
    %66 = vector.broadcast %3 : vector<1x128xf32> to vector<8x128xf32>
    %67 = arith.addf %65, %66 : vector<8x128xf32>
    %cst_47 = arith.constant 0.000000e+00 : f32
    %68 = vector.broadcast %cst_47 : f32 to vector<8x128xf32>
    %69 = arith.maximumf %67, %68 : vector<8x128xf32>
    %c0_48 = arith.constant 0 : index
    %c0_49 = arith.constant 0 : index
    %70 = vector.load %arg8[%c0_48, %c0_49] : memref<8x128xf32, #tpu.memory_space<vmem>>, vector<8x128xf32>
    tpu.vector_store %arg8[%c0_48, %c0_49], %69 {strides = array<i32>} : memref<8x128xf32, #tpu.memory_space<vmem>>, vector<8x128xf32>,
    %c0_i32_50 = arith.constant 0 : i32
    %c2_i32_51 = arith.constant 2 : i32
    %71 = arith.addi %c2_i32_51, %c0_i32_50 : i32
    %c0_52 = arith.constant 0 : index
    %72 = arith.index_cast %71 : i32 to index
    %73 = memref.load %arg0[%c0_52, %72] : memref<3x8xi32, #tpu.memory_space<smem>>
    %74 = arith.index_cast %c0_i32_50 : i32 to index
    %c0_53 = arith.constant 0 : index
    %75 = vector.load %arg8[%74, %c0_53] : memref<8x128xf32, #tpu.memory_space<vmem>>, vector<1x128xf32>
    %76 = arith.index_cast %73 : i32 to index
    %c0_54 = arith.constant 0 : index
    %77 = vector.load %arg7[%76, %c0_54] : memref<16x128xf32, #tpu.memory_space<vmem>>, vector<1x128xf32>
    tpu.vector_store %arg7[%76, %c0_54], %75 {strides = array<i32>} : memref<16x128xf32, #tpu.memory_space<vmem>>, vector<1x128xf32>,
    %c1_i32_55 = arith.constant 1 : i32
    %c0_i32_56 = arith.constant 0 : i32
    %c3_i32 = arith.constant 3 : i32
    %78 = arith.addi %c3_i32, %c0_i32_56 : i32
    %c1_57 = arith.constant 1 : index
    %79 = arith.index_cast %78 : i32 to index
    %80 = memref.load %arg0[%c1_57, %79] : memref<3x8xi32, #tpu.memory_space<smem>>
    %c3_i32_58 = arith.constant 3 : i32
    %81 = arith.addi %c3_i32_58, %c0_i32_56 : i32
    %c2_59 = arith.constant 2 : index
    %82 = arith.index_cast %81 : i32 to index
    %83 = memref.load %arg0[%c2_59, %82] : memref<3x8xi32, #tpu.memory_space<smem>>
    %84 = arith.index_cast %80 : i32 to index
    %c0_60 = arith.constant 0 : index
    %85 = vector.load %arg7[%84, %c0_60] : memref<16x128xf32, #tpu.memory_space<vmem>>, vector<1x128xf32>
    %86 = arith.index_cast %83 : i32 to index
    %c0_61 = arith.constant 0 : index
    %87 = vector.load %arg7[%86, %c0_61] : memref<16x128xf32, #tpu.memory_space<vmem>>, vector<1x128xf32>
    %88 = arith.addf %85, %87 : vector<1x128xf32>
    %89 = arith.index_cast %c0_i32_56 : i32 to index
    %c0_62 = arith.constant 0 : index
    %90 = vector.load %arg8[%89, %c0_62] : memref<8x128xf32, #tpu.memory_space<vmem>>, vector<1x128xf32>
    tpu.vector_store %arg8[%89, %c0_62], %88 {strides = array<i32>} : memref<8x128xf32, #tpu.memory_space<vmem>>, vector<1x128xf32>,
    %c1_i32_63 = arith.constant 1 : i32
    %c0_64 = arith.constant 0 : index
    %c0_65 = arith.constant 0 : index
    %91 = vector.load %arg8[%c0_64, %c0_65] : memref<8x128xf32, #tpu.memory_space<vmem>>, vector<8x128xf32>
    %cst_66 = arith.constant dense<0.000000e+00> : vector<8x128xf32>
    %92 = tpu.matmul %91, %2, %cst_66 {dimension_numbers = #tpu.dot_dimension_numbers<[1], [0], [0], [1], [0, 0, 1, 1], [], []>} : vector<8x128xf32>, vector<128x128xf32>, vector<8x128xf32> -> vector<8x128xf32>
    %93 = vector.broadcast %3 : vector<1x128xf32> to vector<8x128xf32>
    %94 = arith.addf %92, %93 : vector<8x128xf32>
    %cst_67 = arith.constant 0.000000e+00 : f32
    %95 = vector.broadcast %cst_67 : f32 to vector<8x128xf32>
    %96 = arith.maximumf %94, %95 : vector<8x128xf32>
    %c0_68 = arith.constant 0 : index
    %c0_69 = arith.constant 0 : index
    %97 = vector.load %arg8[%c0_68, %c0_69] : memref<8x128xf32, #tpu.memory_space<vmem>>, vector<8x128xf32>
    tpu.vector_store %arg8[%c0_68, %c0_69], %96 {strides = array<i32>} : memref<8x128xf32, #tpu.memory_space<vmem>>, vector<8x128xf32>,
    %c0_i32_70 = arith.constant 0 : i32
    %c3_i32_71 = arith.constant 3 : i32
    %98 = arith.addi %c3_i32_71, %c0_i32_70 : i32
    %c0_72 = arith.constant 0 : index
    %99 = arith.index_cast %98 : i32 to index
    %100 = memref.load %arg0[%c0_72, %99] : memref<3x8xi32, #tpu.memory_space<smem>>
    %101 = arith.index_cast %c0_i32_70 : i32 to index
    %c0_73 = arith.constant 0 : index
    %102 = vector.load %arg8[%101, %c0_73] : memref<8x128xf32, #tpu.memory_space<vmem>>, vector<1x128xf32>
    %103 = arith.index_cast %100 : i32 to index
    %c0_74 = arith.constant 0 : index
    %104 = vector.load %arg7[%103, %c0_74] : memref<16x128xf32, #tpu.memory_space<vmem>>, vector<1x128xf32>
    tpu.vector_store %arg7[%103, %c0_74], %102 {strides = array<i32>} : memref<16x128xf32, #tpu.memory_space<vmem>>, vector<1x128xf32>,
    %c1_i32_75 = arith.constant 1 : i32
    %c0_76 = arith.constant 0 : index
    %c0_77 = arith.constant 0 : index
    %105 = vector.load %arg7[%c0_76, %c0_77] : memref<16x128xf32, #tpu.memory_space<vmem>>, vector<16x128xf32>
    %c0_78 = arith.constant 0 : index
    %c0_79 = arith.constant 0 : index
    %106 = vector.load %arg4[%c0_78, %c0_79] : memref<128x128xf32, #tpu.memory_space<vmem>>, vector<128x128xf32>
    %cst_80 = arith.constant dense<0.000000e+00> : vector<16x128xf32>
    %107 = tpu.matmul %105, %106, %cst_80 {dimension_numbers = #tpu.dot_dimension_numbers<[1], [0], [0], [1], [0, 0, 1, 1], [], []>} : vector<16x128xf32>, vector<128x128xf32>, vector<16x128xf32> -> vector<16x128xf32>
    %c0_81 = arith.constant 0 : index
    %c0_82 = arith.constant 0 : index
    %108 = vector.load %arg5[%c0_81, %c0_82] : memref<1x128xf32, #tpu.memory_space<vmem>>, vector<1x128xf32>
    %109 = vector.broadcast %108 : vector<1x128xf32> to vector<16x128xf32>
    %110 = arith.addf %107, %109 : vector<16x128xf32>
    %c0_83 = arith.constant 0 : index
    %c0_84 = arith.constant 0 : index
    %111 = vector.load %arg6[%c0_83, %c0_84] : memref<16x128xf32, #tpu.memory_space<vmem>>, vector<16x128xf32>
    tpu.vector_store %arg6[%c0_83, %c0_84], %110 {strides = array<i32>} : memref<16x128xf32, #tpu.memory_space<vmem>>, vector<16x128xf32>,
    return
  }
}

</mosaic_0001>

<llo_original>
// kernel: tpu_custom_call.1
$region0: #{tpu_custom_call.1}
  #allocation0 [shape = 'u32[]', space=smem, size = 0x4, offset = 0x4, fixed_abs, tag = 'smem constant byte address 0x4 - core index']
  #allocation1 [shape = 'u32[144,128]{1,0:T(1,128)}', space=vmem, size = 0x12000, scoped, tag = 'internal scratch']
  #allocation2 [shape = 'f32[16,128]{1,0:T(8,128)}', space=vmem, size = 0x2000, scoped, tag = 'scratch operand']
  #allocation3 [shape = 'f32[8,128]{1,0:T(8,128)}', space=vmem, size = 0x1000, scoped, tag = 'scratch operand']
  %s0 = inlined_call_operand.hbm [shape: s32[3,8], index: 0, kind: input, shape index: {}]
  %s1 = inlined_call_operand.hbm [shape: f32[16,128], index: 1, kind: input, shape index: {}]
  %s2 = inlined_call_operand.hbm [shape: f32[128,128], index: 2, kind: input, shape index: {}]
  %s3 = inlined_call_operand.vmem [shape: f32[1,128], index: 3, kind: input, shape index: {}]
  %s4 = inlined_call_operand.hbm [shape: f32[128,128], index: 4, kind: input, shape index: {}]
  %s5 = inlined_call_operand.vmem [shape: f32[1,128], index: 5, kind: input, shape index: {}]
  %s6 = inlined_call_operand.hbm [shape: f32[16,128], index: 6, kind: output, shape index: {}]
  %s7 = sld [smem:[#allocation0]]
  $region50: #{tpu_custom_call.1} parent=0
    _
  %s9 = ssub.s32 1, %s7
  %s10 = scalar_select 0, %s9, %s7
  $region1: #{tpu_custom_call.1} parent=0
    #allocation4 [shape = 'u8[2048]{0}', space=smem, size = 0x800, scoped, tag = 'input window, operand 0, single buffered']
    #allocation5 [shape = 's32[1]{0}', space=sflag, size = 0x4, scoped, tag = 'scoped memory for tpu_custom_call.1']
    #allocation6 [shape = 's32[1]{0}', space=sflag, size = 0x4, scoped, tag = 'scoped memory for tpu_custom_call.1']
    #allocation7 [shape = 's32[1]{0}', space=sflag, size = 0x4, scoped, tag = 'scoped memory for tpu_custom_call.1']
    #allocation8 [shape = 'u8[8192]{0}', space=vmem, size = 0x2000, scoped, tag = 'input window, operand 1, single buffered']
    #allocation9 [shape = 'u8[65536]{0}', space=vmem, size = 0x10000, scoped, tag = 'input window, operand 2, single buffered']
    #allocation10 [shape = 's32[1]{0}', space=sflag, size = 0x4, scoped, tag = 'scoped memory for tpu_custom_call.1']
    #allocation11 [shape = 'u8[65536]{0}', space=vmem, size = 0x10000, scoped, tag = 'input window, operand 4, single buffered']
    #allocation12 [shape = 'u8[8192]{0}', space=vmem, size = 0x2000, scoped, tag = 'output window, operand 0, single buffered']
    %11 = vsyncpa [#allocation7], 0
    %12 = vsyncpa [#allocation5], 0
    %13 = vsyncpa [#allocation10], 0
    %14 = vsyncpa [#allocation6], 0
    // Predicated region
    $region2: #{tpu_custom_call.1} parent=1 // pred_check
      _
    $region3: #{tpu_custom_call.1} parent=1 // pred_check_branch
      %16 = sbr.rel (0) target = $region5
    $region4: #{tpu_custom_call.1} parent=1 // pred_region
      %s18 = ssub.s32 64, 64
      %19 = vsyncadd [#allocation7], %s18
      %22 = dma.hbm_to_smem %s0, 64, [#allocation4], [#allocation7]
    $region5: #{tpu_custom_call.1} parent=1 // pred_fallthru
      _
    // Predicated region
    $region6: #{tpu_custom_call.1} parent=1 // pred_check
      _
    $region7: #{tpu_custom_call.1} parent=1 // pred_check_branch
      %24 = sbr.rel (0) target = $region9
    $region8: #{tpu_custom_call.1} parent=1 // pred_region
      %s26 = ssub.s32 256, 256
      %27 = vsyncadd [#allocation5], %s26
      %s28 = sshll.u32 [#allocation8], 4
      %s29 = int_to_ptr.vmem [resolvable:$true] %s28
      %34 = dma.hbm_to_vmem [thread:$0]  %s1, 256, %s29, [#allocation5], 128, 128, 8
    $region9: #{tpu_custom_call.1} parent=1 // pred_fallthru
      _
    // Predicated region
    $region10: #{tpu_custom_call.1} parent=1 // pred_check
      _
    $region11: #{tpu_custom_call.1} parent=1 // pred_check_branch
      %36 = sbr.rel (0) target = $region13
    $region12: #{tpu_custom_call.1} parent=1 // pred_region
      %s38 = ssub.s32 2048, 2048
      %39 = vsyncadd [#allocation10], %s38
      %s40 = sshll.u32 [#allocation9], 4
      %s41 = int_to_ptr.vmem [resolvable:$true] %s40
      %46 = dma.hbm_to_vmem [thread:$0]  %s2, 2048, %s41, [#allocation10], 128, 128, 8
    $region13: #{tpu_custom_call.1} parent=1 // pred_fallthru
      _
    // Predicated region
    $region14: #{tpu_custom_call.1} parent=1 // pred_check
      _
    $region15: #{tpu_custom_call.1} parent=1 // pred_check_branch
      %48 = sbr.rel (0) target = $region17
    $region16: #{tpu_custom_call.1} parent=1 // pred_region
      _
    $region17: #{tpu_custom_call.1} parent=1 // pred_fallthru
      _
    // Predicated region
    $region18: #{tpu_custom_call.1} parent=1 // pred_check
      _
    $region19: #{tpu_custom_call.1} parent=1 // pred_check_branch
      %50 = sbr.rel (0) target = $region21
    $region20: #{tpu_custom_call.1} parent=1 // pred_region
      %s52 = ssub.s32 2048, 2048
      %53 = vsyncadd [#allocation10], %s52
      %s54 = sshll.u32 [#allocation11], 4
      %s55 = int_to_ptr.vmem [resolvable:$true] %s54
      %60 = dma.hbm_to_vmem [thread:$0]  %s4, 2048, %s55, [#allocation10], 128, 128, 8
    $region21: #{tpu_custom_call.1} parent=1 // pred_fallthru
      _
    // Predicated region
    $region22: #{tpu_custom_call.1} parent=1 // pred_check
      _
    $region23: #{tpu_custom_call.1} parent=1 // pred_check_branch
      %62 = sbr.rel (0) target = $region25
    $region24: #{tpu_custom_call.1} parent=1 // pred_region
      _
    $region25: #{tpu_custom_call.1} parent=1 // pred_fallthru
      _
    // Predicated region
    $region26: #{tpu_custom_call.1} parent=1 // pred_check
      _
    $region27: #{tpu_custom_call.1} parent=1 // pred_check_branch
      %64 = sbr.rel (0) target = $region29
    $region28: #{tpu_custom_call.1} parent=1 // pred_region
      %65 = dma.done [#allocation7], 64
    $region29: #{tpu_custom_call.1} parent=1 // pred_fallthru
      _
    // Predicated region
    $region30: #{tpu_custom_call.1} parent=1 // pred_check
      _
    $region31: #{tpu_custom_call.1} parent=1 // pred_check_branch
      %67 = sbr.rel (0) target = $region33
    $region32: #{tpu_custom_call.1} parent=1 // pred_region
      %68 = dma.done [#allocation5], 256
    $region33: #{tpu_custom_call.1} parent=1 // pred_fallthru
      _
    // Predicated region
    $region34: #{tpu_custom_call.1} parent=1 // pred_check
      _
    $region35: #{tpu_custom_call.1} parent=1 // pred_check_branch
      %70 = sbr.rel (0) target = $region37
    $region36: #{tpu_custom_call.1} parent=1 // pred_region
      %71 = dma.done [#allocation10], 2048
    $region37: #{tpu_custom_call.1} parent=1 // pred_fallthru
      _
    // Predicated region
    $region38: #{tpu_custom_call.1} parent=1 // pred_check
      _
    $region39: #{tpu_custom_call.1} parent=1 // pred_check_branch
      %73 = sbr.rel (0) target = $region41
    $region40: #{tpu_custom_call.1} parent=1 // pred_region
      %74 = dma.done [#allocation10], 2048
    $region41: #{tpu_custom_call.1} parent=1 // pred_fallthru
      _
    %75 = sfence
    %v76 = vld [vmem:[#allocation8] sm:$0xff]
    %v77 = vld [vmem:[#allocation8 + $0x8] sm:$0xff]
    %78 = vst [vmem:[#allocation2] sm:$0xff] %v76
    %79 = vst [vmem:[#allocation2 + $0x8] sm:$0xff] %v77
    %v80 = vld [vmem:[#allocation9] sm:$0xff]
    %v81 = vld [vmem:[#allocation9 + $0x8] sm:$0xff]
    %v82 = vld [vmem:[#allocation9 + $0x10] sm:$0xff]
    %v83 = vld [vmem:[#allocation9 + $0x18] sm:$0xff]
    %v84 = vld [vmem:[#allocation9 + $0x20] sm:$0xff]
    %v85 = vld [vmem:[#allocation9 + $0x28] sm:$0xff]
    %v86 = vld [vmem:[#allocation9 + $0x30] sm:$0xff]
    %v87 = vld [vmem:[#allocation9 + $0x38] sm:$0xff]
    %v88 = vld [vmem:[#allocation9 + $0x40] sm:$0xff]
    %v89 = vld [vmem:[#allocation9 + $0x48] sm:$0xff]
    %v90 = vld [vmem:[#allocation9 + $0x50] sm:$0xff]
    %v91 = vld [vmem:[#allocation9 + $0x58] sm:$0xff]
    %v92 = vld [vmem:[#allocation9 + $0x60] sm:$0xff]
    %v93 = vld [vmem:[#allocation9 + $0x68] sm:$0xff]
    %v94 = vld [vmem:[#allocation9 + $0x70] sm:$0xff]
    %v95 = vld [vmem:[#allocation9 + $0x78] sm:$0xff]
    %v96 = vld [vmem:[%s3] sm:$0x1]
    %s97 = sld [smem:[#allocation4 + $0x80]]
    %s98 = sld [smem:[#allocation4 + $0x100]]
    %s99 = scalar_lea.vmem [#allocation2], %s97
    %v100 = vld [vmem:[%s99] sm:$0x1]
    %s101 = scalar_lea.vmem [#allocation2], %s98
    %v102 = vld [vmem:[%s101] sm:$0x1]
    %v103 = vadd.f32 %v100, %v102
    %104 = vst [vmem:[#allocation3] sm:$0x1] %v103
    %s105 = sld [smem:[#allocation4 + $0x81]]
    %s106 = sld [smem:[#allocation4 + $0x101]]
    %s107 = scalar_lea.vmem [#allocation2], %s105
    %v108 = vld [vmem:[%s107] sm:$0x1]
    %s109 = scalar_lea.vmem [#allocation2], %s106
    %v110 = vld [vmem:[%s109] sm:$0x1]
    %v111 = vadd.f32 %v108, %v110
    %112 = vst [vmem:[#allocation3 + $0x1] sm:$0x1] %v111
    %v113 = vld [vmem:[#allocation3] sm:$0xff]
    %v115 = vlaneseq
    %v116 = vshrl.u32 %v115, 7
    %v117 = vsub.s32 0, %v116
    %v118 = vrot.slane %v96, %v117
    %120 = vmatprep.subr.mxu0 0.0
    %121 = vmatpush1.msra.mxu0 %v95
    %122 = vmatprep.subr.mxu0 0.0
    %123 = vmatpush1.msra.mxu0 %v94
    %124 = vmatprep.subr.mxu0 0.0
    %125 = vmatpush1.msra.mxu0 %v93
    %126 = vmatprep.subr.mxu0 0.0
    %127 = vmatpush1.msra.mxu0 %v92
    %128 = vmatprep.subr.mxu0 0.0
    %129 = vmatpush1.msra.mxu0 %v91
    %130 = vmatprep.subr.mxu0 0.0
    %131 = vmatpush1.msra.mxu0 %v90
    %132 = vmatprep.subr.mxu0 0.0
    %133 = vmatpush1.msra.mxu0 %v89
    %134 = vmatprep.subr.mxu0 0.0
    %135 = vmatpush1.msra.mxu0 %v88
    %136 = vmatprep.subr.mxu0 0.0
    %137 = vmatpush1.msra.mxu0 %v87
    %138 = vmatprep.subr.mxu0 0.0
    %139 = vmatpush1.msra.mxu0 %v86
    %140 = vmatprep.subr.mxu0 0.0
    %141 = vmatpush1.msra.mxu0 %v85
    %142 = vmatprep.subr.mxu0 0.0
    %143 = vmatpush1.msra.mxu0 %v84
    %144 = vmatprep.subr.mxu0 0.0
    %145 = vmatpush1.msra.mxu0 %v83
    %146 = vmatprep.subr.mxu0 0.0
    %147 = vmatpush1.msra.mxu0 %v82
    %148 = vmatprep.subr.mxu0 0.0
    %149 = vmatpush1.msra.mxu0 %v81
    %150 = vmatprep.subr.mxu0 0.0
    %151 = vmatpush1.msra.mxu0 %v80
    %152 = vmatprep.subr.mxu0 0.0
    %153 = vmatpush2.msra.mxu0 0.0
    %154 = vmatprep.subr.mxu0 0.0
    %155 = vmatpush2.msra.mxu0 0.0
    %156 = vmatprep.subr.mxu0 0.0
    %157 = vmatpush2.msra.mxu0 0.0
    %158 = vmatprep.subr.mxu0 0.0
    %159 = vmatpush2.msra.mxu0 0.0
    %160 = vmatprep.subr.mxu0 0.0
    %161 = vmatpush2.msra.mxu0 0.0
    %162 = vmatprep.subr.mxu0 0.0
    %163 = vmatpush2.msra.mxu0 0.0
    %164 = vmatprep.subr.mxu0 0.0
    %165 = vmatpush2.msra.mxu0 0.0
    %166 = vmatprep.subr.mxu0 0.0
    %167 = vmatpush2.msra.mxu0 0.0
    %168 = vmatprep.subr.mxu0 0.0
    %169 = vmatpush2.msra.mxu0 0.0
    %170 = vmatprep.subr.mxu0 0.0
    %171 = vmatpush2.msra.mxu0 0.0
    %172 = vmatprep.subr.mxu0 0.0
    %173 = vmatpush2.msra.mxu0 0.0
    %174 = vmatprep.subr.mxu0 0.0
    %175 = vmatpush2.msra.mxu0 0.0
    %176 = vmatprep.subr.mxu0 0.0
    %177 = vmatpush2.msra.mxu0 0.0
    %178 = vmatprep.subr.mxu0 0.0
    %179 = vmatpush2.msra.mxu0 0.0
    %180 = vmatprep.subr.mxu0 0.0
    %181 = vmatpush2.msra.mxu0 0.0
    %182 = vmatprep.subr.mxu0 0.0
    %183 = vmatpush2.msra.mxu0 0.0
    %184 = vmatprep.mubr.f32.mxu0 0.0
    %185 = vmatmul.mubr.f32.gmra.mxu0 %v113
    %v186 = vpop.f32.mrf.mxu0
    %v187 = vadd.f32 %v118, %v186
    %v188 = vpop.f32.mrf.mxu0
    %189 = vdwg.mxu0
    %v190 = vmax.f32 %v187, 0.0
    %191 = vst [vmem:[#allocation3] sm:$0xff] %v190
    %s192 = sld [smem:[#allocation4]]
    %v193 = vld [vmem:[#allocation3] sm:$0x1]
    %s194 = scalar_lea.vmem [#allocation2], %s192
    %195 = vst [vmem:[%s194] sm:$0x1] %v193
    %s196 = sld [smem:[#allocation4 + $0x1]]
    %v197 = vld [vmem:[#allocation3 + $0x1] sm:$0x1]
    %s198 = scalar_lea.vmem [#allocation2], %s196
    %199 = vst [vmem:[%s198] sm:$0x1] %v197
    %s200 = sld [smem:[#allocation4 + $0x82]]
    %s201 = sld [smem:[#allocation4 + $0x102]]
    %s202 = scalar_lea.vmem [#allocation2], %s200
    %v203 = vld [vmem:[%s202] sm:$0x1]
    %s204 = scalar_lea.vmem [#allocation2], %s201
    %v205 = vld [vmem:[%s204] sm:$0x1]
    %v206 = vadd.f32 %v203, %v205
    %207 = vst [vmem:[#allocation3] sm:$0x1] %v206
    %v208 = vld [vmem:[#allocation3] sm:$0xff]
    %209 = vmatprep.subr.mxu0 0.0
    %210 = vmatpush1.msra.mxu0 %v95
    %211 = vmatprep.subr.mxu0 0.0
    %212 = vmatpush1.msra.mxu0 %v94
    %213 = vmatprep.subr.mxu0 0.0
    %214 = vmatpush1.msra.mxu0 %v93
    %215 = vmatprep.subr.mxu0 0.0
    %216 = vmatpush1.msra.mxu0 %v92
    %217 = vmatprep.subr.mxu0 0.0
    %218 = vmatpush1.msra.mxu0 %v91
    %219 = vmatprep.subr.mxu0 0.0
    %220 = vmatpush1.msra.mxu0 %v90
    %221 = vmatprep.subr.mxu0 0.0
    %222 = vmatpush1.msra.mxu0 %v89
    %223 = vmatprep.subr.mxu0 0.0
    %224 = vmatpush1.msra.mxu0 %v88
    %225 = vmatprep.subr.mxu0 0.0
    %226 = vmatpush1.msra.mxu0 %v87
    %227 = vmatprep.subr.mxu0 0.0
    %228 = vmatpush1.msra.mxu0 %v86
    %229 = vmatprep.subr.mxu0 0.0
    %230 = vmatpush1.msra.mxu0 %v85
    %231 = vmatprep.subr.mxu0 0.0
    %232 = vmatpush1.msra.mxu0 %v84
    %233 = vmatprep.subr.mxu0 0.0
    %234 = vmatpush1.msra.mxu0 %v83
    %235 = vmatprep.subr.mxu0 0.0
    %236 = vmatpush1.msra.mxu0 %v82
    %237 = vmatprep.subr.mxu0 0.0
    %238 = vmatpush1.msra.mxu0 %v81
    %239 = vmatprep.subr.mxu0 0.0
    %240 = vmatpush1.msra.mxu0 %v80
    %241 = vmatprep.subr.mxu0 0.0
    %242 = vmatpush2.msra.mxu0 0.0
    %243 = vmatprep.subr.mxu0 0.0
    %244 = vmatpush2.msra.mxu0 0.0
    %245 = vmatprep.subr.mxu0 0.0
    %246 = vmatpush2.msra.mxu0 0.0
    %247 = vmatprep.subr.mxu0 0.0
    %248 = vmatpush2.msra.mxu0 0.0
    %249 = vmatprep.subr.mxu0 0.0
    %250 = vmatpush2.msra.mxu0 0.0
    %251 = vmatprep.subr.mxu0 0.0
    %252 = vmatpush2.msra.mxu0 0.0
    %253 = vmatprep.subr.mxu0 0.0
    %254 = vmatpush2.msra.mxu0 0.0
    %255 = vmatprep.subr.mxu0 0.0
    %256 = vmatpush2.msra.mxu0 0.0
    %257 = vmatprep.subr.mxu0 0.0
    %258 = vmatpush2.msra.mxu0 0.0
    %259 = vmatprep.subr.mxu0 0.0
    %260 = vmatpush2.msra.mxu0 0.0
    %261 = vmatprep.subr.mxu0 0.0
    %262 = vmatpush2.msra.mxu0 0.0
    %263 = vmatprep.subr.mxu0 0.0
    %264 = vmatpush2.msra.mxu0 0.0
    %265 = vmatprep.subr.mxu0 0.0
    %266 = vmatpush2.msra.mxu0 0.0
    %267 = vmatprep.subr.mxu0 0.0
    %268 = vmatpush2.msra.mxu0 0.0
    %269 = vmatprep.subr.mxu0 0.0
    %270 = vmatpush2.msra.mxu0 0.0
    %271 = vmatprep.subr.mxu0 0.0
    %272 = vmatpush2.msra.mxu0 0.0
    %273 = vmatprep.mubr.f32.mxu0 0.0
    %274 = vmatmul.mubr.f32.gmra.mxu0 %v208
    %v275 = vpop.f32.mrf.mxu0
    %v276 = vadd.f32 %v118, %v275
    %v277 = vpop.f32.mrf.mxu0
    %278 = vdwg.mxu0
    %v279 = vmax.f32 %v276, 0.0
    %280 = vst [vmem:[#allocation3] sm:$0xff] %v279
    %s281 = sld [smem:[#allocation4 + $0x2]]
    %v282 = vld [vmem:[#allocation3] sm:$0x1]
    %s283 = scalar_lea.vmem [#allocation2], %s281
    %284 = vst [vmem:[%s283] sm:$0x1] %v282
    %s285 = sld [smem:[#allocation4 + $0x83]]
    %s286 = sld [smem:[#allocation4 + $0x103]]
    %s287 = scalar_lea.vmem [#allocation2], %s285
    %v288 = vld [vmem:[%s287] sm:$0x1]
    %s289 = scalar_lea.vmem [#allocation2], %s286
    %v290 = vld [vmem:[%s289] sm:$0x1]
    %v291 = vadd.f32 %v288, %v290
    %292 = vst [vmem:[#allocation3] sm:$0x1] %v291
    %v293 = vld [vmem:[#allocation3] sm:$0xff]
    %294 = vmatprep.subr.mxu0 0.0
    %295 = vmatpush1.msra.mxu0 %v95
    %296 = vmatprep.subr.mxu0 0.0
    %297 = vmatpush1.msra.mxu0 %v94
    %298 = vmatprep.subr.mxu0 0.0
    %299 = vmatpush1.msra.mxu0 %v93
    %300 = vmatprep.subr.mxu0 0.0
    %301 = vmatpush1.msra.mxu0 %v92
    %302 = vmatprep.subr.mxu0 0.0
    %303 = vmatpush1.msra.mxu0 %v91
    %304 = vmatprep.subr.mxu0 0.0
    %305 = vmatpush1.msra.mxu0 %v90
    %306 = vmatprep.subr.mxu0 0.0
    %307 = vmatpush1.msra.mxu0 %v89
    %308 = vmatprep.subr.mxu0 0.0
    %309 = vmatpush1.msra.mxu0 %v88
    %310 = vmatprep.subr.mxu0 0.0
    %311 = vmatpush1.msra.mxu0 %v87
    %312 = vmatprep.subr.mxu0 0.0
    %313 = vmatpush1.msra.mxu0 %v86
    %314 = vmatprep.subr.mxu0 0.0
    %315 = vmatpush1.msra.mxu0 %v85
    %316 = vmatprep.subr.mxu0 0.0
    %317 = vmatpush1.msra.mxu0 %v84
    %318 = vmatprep.subr.mxu0 0.0
    %319 = vmatpush1.msra.mxu0 %v83
    %320 = vmatprep.subr.mxu0 0.0
    %321 = vmatpush1.msra.mxu0 %v82
    %322 = vmatprep.subr.mxu0 0.0
    %323 = vmatpush1.msra.mxu0 %v81
    %324 = vmatprep.subr.mxu0 0.0
    %325 = vmatpush1.msra.mxu0 %v80
    %326 = vmatprep.subr.mxu0 0.0
    %327 = vmatpush2.msra.mxu0 0.0
    %328 = vmatprep.subr.mxu0 0.0
    %329 = vmatpush2.msra.mxu0 0.0
    %330 = vmatprep.subr.mxu0 0.0
    %331 = vmatpush2.msra.mxu0 0.0
    %332 = vmatprep.subr.mxu0 0.0
    %333 = vmatpush2.msra.mxu0 0.0
    %334 = vmatprep.subr.mxu0 0.0
    %335 = vmatpush2.msra.mxu0 0.0
    %336 = vmatprep.subr.mxu0 0.0
    %337 = vmatpush2.msra.mxu0 0.0
    %338 = vmatprep.subr.mxu0 0.0
    %339 = vmatpush2.msra.mxu0 0.0
    %340 = vmatprep.subr.mxu0 0.0
    %341 = vmatpush2.msra.mxu0 0.0
    %342 = vmatprep.subr.mxu0 0.0
    %343 = vmatpush2.msra.mxu0 0.0
    %344 = vmatprep.subr.mxu0 0.0
    %345 = vmatpush2.msra.mxu0 0.0
    %346 = vmatprep.subr.mxu0 0.0
    %347 = vmatpush2.msra.mxu0 0.0
    %348 = vmatprep.subr.mxu0 0.0
    %349 = vmatpush2.msra.mxu0 0.0
    %350 = vmatprep.subr.mxu0 0.0
    %351 = vmatpush2.msra.mxu0 0.0
    %352 = vmatprep.subr.mxu0 0.0
    %353 = vmatpush2.msra.mxu0 0.0
    %354 = vmatprep.subr.mxu0 0.0
    %355 = vmatpush2.msra.mxu0 0.0
    %356 = vmatprep.subr.mxu0 0.0
    %357 = vmatpush2.msra.mxu0 0.0
    %358 = vmatprep.mubr.f32.mxu0 0.0
    %359 = vmatmul.mubr.f32.gmra.mxu0 %v293
    %v360 = vpop.f32.mrf.mxu0
    %v361 = vadd.f32 %v118, %v360
    %v362 = vpop.f32.mrf.mxu0
    %363 = vdwg.mxu0
    %v364 = vmax.f32 %v361, 0.0
    %365 = vst [vmem:[#allocation3] sm:$0xff] %v364
    %s366 = sld [smem:[#allocation4 + $0x3]]
    %v367 = vld [vmem:[#allocation3] sm:$0x1]
    %s368 = scalar_lea.vmem [#allocation2], %s366
    %369 = vst [vmem:[%s368] sm:$0x1] %v367
    %v370 = vld [vmem:[#allocation2] sm:$0xff]
    %v371 = vld [vmem:[#allocation2 + $0x8] sm:$0xff]
    %v372 = vld [vmem:[#allocation11] sm:$0xff]
    %v373 = vld [vmem:[#allocation11 + $0x8] sm:$0xff]
    %v374 = vld [vmem:[#allocation11 + $0x10] sm:$0xff]
    %v375 = vld [vmem:[#allocation11 + $0x18] sm:$0xff]
    %v376 = vld [vmem:[#allocation11 + $0x20] sm:$0xff]
    %v377 = vld [vmem:[#allocation11 + $0x28] sm:$0xff]
    %v378 = vld [vmem:[#allocation11 + $0x30] sm:$0xff]
    %v379 = vld [vmem:[#allocation11 + $0x38] sm:$0xff]
    %v380 = vld [vmem:[#allocation11 + $0x40] sm:$0xff]
    %v381 = vld [vmem:[#allocation11 + $0x48] sm:$0xff]
    %v382 = vld [vmem:[#allocation11 + $0x50] sm:$0xff]
    %v383 = vld [vmem:[#allocation11 + $0x58] sm:$0xff]
    %v384 = vld [vmem:[#allocation11 + $0x60] sm:$0xff]
    %v385 = vld [vmem:[#allocation11 + $0x68] sm:$0xff]
    %v386 = vld [vmem:[#allocation11 + $0x70] sm:$0xff]
    %v387 = vld [vmem:[#allocation11 + $0x78] sm:$0xff]
    %v388 = vld [vmem:[%s5] sm:$0x1]
    %v390 = vlaneseq
    %v391 = vshrl.u32 %v390, 7
    %v392 = vsub.s32 0, %v391
    %v393 = vrot.slane %v388, %v392
    %395 = vmatprep.subr.mxu0 0.0
    %396 = vmatpush1.msra.mxu0 %v387
    %397 = vmatprep.subr.mxu0 0.0
    %398 = vmatpush1.msra.mxu0 %v386
    %399 = vmatprep.subr.mxu0 0.0
    %400 = vmatpush1.msra.mxu0 %v385
    %401 = vmatprep.subr.mxu0 0.0
    %402 = vmatpush1.msra.mxu0 %v384
    %403 = vmatprep.subr.mxu0 0.0
    %404 = vmatpush1.msra.mxu0 %v383
    %405 = vmatprep.subr.mxu0 0.0
    %406 = vmatpush1.msra.mxu0 %v382
    %407 = vmatprep.subr.mxu0 0.0
    %408 = vmatpush1.msra.mxu0 %v381
    %409 = vmatprep.subr.mxu0 0.0
    %410 = vmatpush1.msra.mxu0 %v380
    %411 = vmatprep.subr.mxu0 0.0
    %412 = vmatpush1.msra.mxu0 %v379
    %413 = vmatprep.subr.mxu0 0.0
    %414 = vmatpush1.msra.mxu0 %v378
    %415 = vmatprep.subr.mxu0 0.0
    %416 = vmatpush1.msra.mxu0 %v377
    %417 = vmatprep.subr.mxu0 0.0
    %418 = vmatpush1.msra.mxu0 %v376
    %419 = vmatprep.subr.mxu0 0.0
    %420 = vmatpush1.msra.mxu0 %v375
    %421 = vmatprep.subr.mxu0 0.0
    %422 = vmatpush1.msra.mxu0 %v374
    %423 = vmatprep.subr.mxu0 0.0
    %424 = vmatpush1.msra.mxu0 %v373
    %425 = vmatprep.subr.mxu0 0.0
    %426 = vmatpush1.msra.mxu0 %v372
    %427 = vmatprep.subr.mxu0 0.0
    %428 = vmatpush2.msra.mxu0 0.0
    %429 = vmatprep.subr.mxu0 0.0
    %430 = vmatpush2.msra.mxu0 0.0
    %431 = vmatprep.subr.mxu0 0.0
    %432 = vmatpush2.msra.mxu0 0.0
    %433 = vmatprep.subr.mxu0 0.0
    %434 = vmatpush2.msra.mxu0 0.0
    %435 = vmatprep.subr.mxu0 0.0
    %436 = vmatpush2.msra.mxu0 0.0
    %437 = vmatprep.subr.mxu0 0.0
    %438 = vmatpush2.msra.mxu0 0.0
    %439 = vmatprep.subr.mxu0 0.0
    %440 = vmatpush2.msra.mxu0 0.0
    %441 = vmatprep.subr.mxu0 0.0
    %442 = vmatpush2.msra.mxu0 0.0
    %443 = vmatprep.subr.mxu0 0.0
    %444 = vmatpush2.msra.mxu0 0.0
    %445 = vmatprep.subr.mxu0 0.0
    %446 = vmatpush2.msra.mxu0 0.0
    %447 = vmatprep.subr.mxu0 0.0
    %448 = vmatpush2.msra.mxu0 0.0
    %449 = vmatprep.subr.mxu0 0.0
    %450 = vmatpush2.msra.mxu0 0.0
    %451 = vmatprep.subr.mxu0 0.0
    %452 = vmatpush2.msra.mxu0 0.0
    %453 = vmatprep.subr.mxu0 0.0
    %454 = vmatpush2.msra.mxu0 0.0
    %455 = vmatprep.subr.mxu0 0.0
    %456 = vmatpush2.msra.mxu0 0.0
    %457 = vmatprep.subr.mxu0 0.0
    %458 = vmatpush2.msra.mxu0 0.0
    %459 = vmatprep.mubr.f32.mxu0 0.0
    %460 = vmatmul.mubr.f32.gmra.mxu0 %v370
    %v461 = vpop.f32.mrf.mxu0
    %v462 = vadd.f32 %v393, %v461
    %v463 = vpop.f32.mrf.mxu0
    %464 = vmatprep.mubr.f32.mxu0 0.0
    %465 = vmatmul.mubr.f32.gmra.mxu0 %v371
    %v466 = vpop.f32.mrf.mxu0
    %v467 = vadd.f32 %v393, %v466
    %v468 = vpop.f32.mrf.mxu0
    %469 = vdwg.mxu0
    %470 = vst [vmem:[#allocation12] sm:$0xff] %v462
    %471 = vst [vmem:[#allocation12 + $0x8] sm:$0xff] %v467
    // Predicated region
    $region42: #{tpu_custom_call.1} parent=1 // pred_check
      _
    $region43: #{tpu_custom_call.1} parent=1 // pred_check_branch
      %473 = sbr.rel (0) target = $region45
    $region44: #{tpu_custom_call.1} parent=1 // pred_region
      %s475 = ssub.s32 256, 256
      %476 = vsyncadd [#allocation6], %s475
      %s477 = sshll.u32 [#allocation12], 4
      %s478 = int_to_ptr.vmem [resolvable:$true] %s477
      %483 = dma.vmem_to_hbm [thread:$0]  %s478, 256, %s6, [#allocation6], 128, 128, 8
    $region45: #{tpu_custom_call.1} parent=1 // pred_fallthru
      _
    // Predicated region
    $region46: #{tpu_custom_call.1} parent=1 // pred_check
      _
    $region47: #{tpu_custom_call.1} parent=1 // pred_check_branch
      %485 = sbr.rel (0) target = $region49
    $region48: #{tpu_custom_call.1} parent=1 // pred_region
      %486 = dma.done [#allocation6], 256
    $region49: #{tpu_custom_call.1} parent=1 // pred_fallthru
      _
    %487 = vsyncpa [#allocation5], 1
    %488 = vsyncpa [#allocation10], 1
    %489 = vsyncpa [#allocation6], 1
    %490 = vsyncpa [#allocation7], 1

</llo_original>
